<compile_context>
chip_gen: v7x
topology: tpu7x:2x2x1
jax: 0.10.0
libtpu: 0.0.40
codegen_flags: <defaults>
</compile_context>

<pallas_src>
import functools
import math

import jax
import jax.numpy as jnp
from jax.experimental import pallas as pl
from jax.experimental.pallas import tpu as pltpu


# ----------------------------- Pallas kernel ------------------------------ #

def _msmpn_fused_kernel(aa_ref, x_ref, w_ref, b_ref, out_ref,
                        *, n_layers, emb_dim, d, alpha, beta,
                        negative_slope, eps):
    """Entire MsMPN (type==3) forward in one kernel invocation.

    aa_ref : [2N, N]    concat([A; A_sub], axis=0)
    x_ref  : [N, D]     initial node embeddings X
    w_ref  : [L, D, 2D] per-layer concat([W2, W3], axis=1)
    b_ref  : [L, 1, 2D] per-layer concat([b2, b3], axis=1)
    out_ref: [N, emb_dim + L*D]  final concatenated embeddings
    """
    n = x_ref.shape[0]
    aa = aa_ref[...]                      # resident in vregs for all layers
    pre = x_ref[...]

    # final_embeddings[0] = 2 * X
    out_ref[:, :emb_dim] = 2.0 * pre

    for k in range(n_layers):             # small L: static unroll
        # --- merged aggregation: [2N, N] @ [N, D] -> [2N, D] (one MXU op) ---
        agg = jnp.dot(aa, pre, preferred_element_type=jnp.float32)
        all_emb = pre + agg[:n, :]         # pre + A @ pre
        sub_emb = pre * agg[n:, :]         # pre * (A_sub @ pre)

        # --- merged MLP2/MLP3: [2N, D] @ [D, 2D] -> [2N, 2D] (one MXU op) ---
        lhs = jnp.concatenate([all_emb, sub_emb], axis=0)
        h = jnp.dot(lhs, w_ref[k], preferred_element_type=jnp.float32) + b_ref[k]
        h2 = h[:n, :d]                     # all_emb @ W2 + b2   (diag block)
        h3 = h[n:, d:]                     # sub_emb @ W3 + b3   (diag block)

        z2 = alpha * h2
        z3 = beta * h3
        emb = jax.nn.sigmoid(z2) + jnp.where(z3 >= 0, z3, negative_slope * z3)

        # F.normalize(emb, dim=1) == emb / max(||emb||_2, eps)
        #   == emb * rsqrt(max(||emb||^2, eps^2))   (rsqrt -> EUP slot)
        sq = jnp.sum(emb * emb, axis=1, keepdims=True)
        inv = jax.lax.rsqrt(jnp.maximum(sq, eps * eps))
        norm = emb * inv

        col0 = emb_dim + k * d             # static column offset
        out_ref[:, col0:col0 + d] = norm

        pre = emb                          # dropout in eval mode -> identity


# ------------------------------ jitted glue -------------------------------- #

@functools.partial(jax.jit,
                   static_argnames=("n_layers", "emb_dim", "d", "alpha", "beta"))
def msmpn_forward(A, sub_indices, sub_values, X, W, B, *,
                  n_layers, emb_dim, d, alpha, beta):
    """Full MsMPN forward: densify COO sub-graph, then one fused Pallas call."""
    n = A.shape[0]
    # Densify the sparse COO sub-graph (duplicates are summed, matching
    # torch.sparse_coo_tensor @ dense semantics).
    a_sub = jnp.zeros((n, n), jnp.float32).at[
        sub_indices[0], sub_indices[1]
    ].add(sub_values.astype(jnp.float32))

    # Stack the two adjacency operands once; the kernel reuses it every layer.
    aa = jnp.concatenate([A.astype(jnp.float32), a_sub], axis=0)   # [2N, N]

    total_d = emb_dim + n_layers * d
    kernel = functools.partial(
        _msmpn_fused_kernel,
        n_layers=n_layers, emb_dim=emb_dim, d=d,
        alpha=float(alpha), beta=float(beta),
        negative_slope=0.01, eps=1e-12,
    )
    # Small shapes: whole operands resident in VMEM, no grid tiling needed.
    # TODO(synk): for large N, tile AA over rows with a "parallel" grid axis
    # (and bf16 adjacency on v6e/v7x) instead of whole-array VMEM residency.
    return pl.pallas_call(
        kernel,
        out_shape=jax.ShapeDtypeStruct((n, total_d), jnp.float32),
        in_specs=[pl.BlockSpec(memory_space=pltpu.MemorySpace.VMEM)] * 4,
        out_specs=pl.BlockSpec(memory_space=pltpu.MemorySpace.VMEM),
    )(aa, X.astype(jnp.float32), W, B)


# ------------------------------ MsMPN module ------------------------------ #

class MsMPNPallas:
    """JAX/Pallas re-implementation of MsMPN.forward (type==3 branch)."""

    def __init__(self, key, emb_dim, layer_size, alpha, beta, dropout=0.0, type_=3):
        dims = [emb_dim] + list(layer_size)
        # Fused kernel stacks per-layer weights -> requires uniform layer dims.
        assert all(v == dims[0] for v in dims), \
            "fused MsMPN kernel assumes emb_dim == all layer sizes"
        self.d = int(dims[0])
        self.emb_dim = int(emb_dim)
        self.n_layers = len(layer_size)
        self.alpha = float(alpha)
        self.beta = float(beta)
        self.type = type_          # only the type==3 branch is implemented
        self.dropout = dropout     # TODO(synk): dropout modeled in eval mode (identity).

        # Deterministic synthetic parameter init (matches nn.Linear bounds).
        w_blocks, b_blocks = [], []
        for k in range(self.n_layers):
            d_in, d_out = dims[k], dims[k + 1]
            key, k2w, k2b, k3w, k3b = jax.random.split(key, 5)
            bound = 1.0 / math.sqrt(d_in)
            w2 = jax.random.uniform(k2w, (d_in, d_out), jnp.float32, -bound, bound)
            b2 = jax.random.uniform(k2b, (1, d_out), jnp.float32, -bound, bound)
            w3 = jax.random.uniform(k3w, (d_in, d_out), jnp.float32, -bound, bound)
            b3 = jax.random.uniform(k3b, (1, d_out), jnp.float32, -bound, bound)
            w_blocks.append(jnp.concatenate([w2, w3], axis=1))   # [D, 2D]
            b_blocks.append(jnp.concatenate([b2, b3], axis=1))   # [1, 2D]
        self.w = jnp.stack(w_blocks)    # [L, D, 2D]
        self.b = jnp.stack(b_blocks)    # [L, 1, 2D]

    def __call__(self, A, sub_indices, sub_values, X):
        return msmpn_forward(
            A, sub_indices, sub_values, X, self.w, self.b,
            n_layers=self.n_layers, emb_dim=self.emb_dim, d=self.d,
            alpha=self.alpha, beta=self.beta)


# ------------------------- pure-JAX reference check ------------------------ #

def _reference_forward(A, sub_indices, sub_values, X, W, B,
                       n_layers, emb_dim, d, alpha, beta):
    hi = jax.lax.Precision.HIGHEST
    n = A.shape[0]
    a_sub = jnp.zeros((n, n), jnp.float32).at[
        sub_indices[0], sub_indices[1]].add(sub_values)
    pre = X
    finals = [2.0 * X]
    for k in range(n_layers):
        w2, w3 = W[k, :, :d], W[k, :, d:]
        b2, b3 = B[k, :, :d], B[k, :, d:]
        all_emb = pre + jnp.dot(A, pre, precision=hi)
        sub_emb = pre * jnp.dot(a_sub, pre, precision=hi)
        z2 = alpha * (jnp.dot(all_emb, w2, precision=hi) + b2)
        z3 = beta * (jnp.dot(sub_emb, w3, precision=hi) + b3)
        emb = jax.nn.sigmoid(z2) + jnp.where(z3 >= 0, z3, 0.01 * z3)
        nrm = jnp.sqrt(jnp.sum(emb * emb, axis=1, keepdims=True))
        finals.append(emb / jnp.maximum(nrm, 1e-12))
        pre = emb
    return jnp.concatenate(finals, axis=1)


# --------------------------------- main ----------------------------------- #

if __name__ == "__main__":
    key = jax.random.PRNGKey(0)
    N = 16          # number of nodes
    EMB_DIM = 32
    LAYER_SIZE = [32, 32]
    ALPHA, BETA = 0.7, 0.3

    k_a, k_sub_v, k_x, k_params = jax.random.split(key, 4)

    # Dense adjacency A (row-normalized random).
    A = jax.random.uniform(k_a, (N, N), jnp.float32)
    A = A / jnp.sum(A, axis=1, keepdims=True)

    # Sparse sub-graph as COO (indices, values) — a ring graph for determinism.
    rows = jnp.arange(N, dtype=jnp.int32)
    cols = (rows + 1) % N
    sub_indices = jnp.stack([rows, cols], axis=0)               # [2, nnz]
    sub_values = jax.random.uniform(k_sub_v, (N,), jnp.float32)

    # Node features X.
    X = jax.random.normal(k_x, (N, EMB_DIM), jnp.float32)

    model = MsMPNPallas(k_params, EMB_DIM, LAYER_SIZE, ALPHA, BETA)
    out = model(A, sub_indices, sub_values, X)
    out = jax.block_until_ready(out)

    expected_cols = EMB_DIM + sum(LAYER_SIZE)
    assert out.shape == (N, expected_cols), out.shape
    assert bool(jnp.all(jnp.isfinite(out)))

    # Numerical check against a pure-JAX reference of the same math.
    ref = _reference_forward(A, sub_indices, sub_values, X, model.w, model.b,
                             model.n_layers, model.emb_dim, model.d,
                             model.alpha, model.beta)
    max_err = float(jnp.max(jnp.abs(out - ref)))
    assert max_err < 1e-3, f"max abs err {max_err}"

    print("KERNEL_OK")
</pallas_src>

<mosaic_0001>
module attributes {stable_mosaic.version = 11 : i64} {
  func.func private @main(%arg0: i32) attributes {dimension_semantics = [#tpu.dimension_semantics<core_parallel>], iteration_bounds = array<i64: 2>, tpu.core_type = #tpu.core_type<sc_scalar_subcore>, window_params = []} {
    return
  }
}

module attributes {stable_mosaic.version = 11 : i64} {
  func.func private @main(%arg0: i32) attributes {dimension_semantics = [#tpu.dimension_semantics<core_parallel>], iteration_bounds = array<i64: 2>, tpu.core_type = #tpu.core_type<sc_scalar_subcore>, window_params = []} {
    return
  }
}

module attributes {stable_mosaic.version = 11 : i64} {
  func.func @_msmpn_fused_kernel(%arg0: memref<32x16xf32, #tpu.memory_space<vmem>>, %arg1: memref<16x32xf32, #tpu.memory_space<vmem>>, %arg2: memref<2x32x64xf32, #tpu.memory_space<vmem>>, %arg3: memref<2x1x64xf32, #tpu.memory_space<vmem>>, %arg4: memref<16x96xf32, #tpu.memory_space<vmem>>) attributes {dimension_semantics = [], scalar_prefetch = 0 : i64, scratch_operands = 0 : i64, tpu.core_type = #tpu.core_type<tc>} {
    %c0 = arith.constant 0 : index
    %c0_0 = arith.constant 0 : index
    %0 = vector.load %arg0[%c0, %c0_0] : memref<32x16xf32, #tpu.memory_space<vmem>>, vector<32x16xf32>
    %c0_1 = arith.constant 0 : index
    %c0_2 = arith.constant 0 : index
    %1 = vector.load %arg1[%c0_1, %c0_2] : memref<16x32xf32, #tpu.memory_space<vmem>>, vector<16x32xf32>
    %cst = arith.constant 2.000000e+00 : f32
    %2 = vector.broadcast %cst : f32 to vector<16x32xf32>
    %3 = arith.mulf %2, %1 : vector<16x32xf32>
    %c0_3 = arith.constant 0 : index
    %c0_4 = arith.constant 0 : index
    %4 = vector.load %arg4[%c0_3, %c0_4] : memref<16x96xf32, #tpu.memory_space<vmem>>, vector<16x32xf32>
    tpu.vector_store %arg4[%c0_3, %c0_4], %3 {strides = array<i32>} : memref<16x96xf32, #tpu.memory_space<vmem>>, vector<16x32xf32>,
    %cst_5 = arith.constant dense<0.000000e+00> : vector<32x32xf32>
    %5 = tpu.matmul %0, %1, %cst_5 {dimension_numbers = #tpu.dot_dimension_numbers<[1], [0], [0], [1], [0, 0, 1, 1], [], []>} : vector<32x16xf32>, vector<16x32xf32>, vector<32x32xf32> -> vector<32x32xf32>
    %6 = vector.extract_strided_slice %5 {offsets = [0, 0], sizes = [16, 32], strides = [1, 1]} : vector<32x32xf32> to vector<16x32xf32>
    %7 = arith.addf %1, %6 : vector<16x32xf32>
    %8 = vector.extract_strided_slice %5 {offsets = [16, 0], sizes = [16, 32], strides = [1, 1]} : vector<32x32xf32> to vector<16x32xf32>
    %9 = arith.mulf %1, %8 : vector<16x32xf32>
    %10 = tpu.concatenate %7, %9 in 0 : vector<16x32xf32>, vector<16x32xf32> -> vector<32x32xf32>
    %c0_6 = arith.constant 0 : index
    %c0_7 = arith.constant 0 : index
    %c0_8 = arith.constant 0 : index
    %11 = vector.load %arg2[%c0_6, %c0_7, %c0_8] : memref<2x32x64xf32, #tpu.memory_space<vmem>>, vector<1x32x64xf32>
    %12 = vector.shape_cast %11 : vector<1x32x64xf32> to vector<32x64xf32>
    %cst_9 = arith.constant dense<0.000000e+00> : vector<32x64xf32>
    %13 = tpu.matmul %10, %12, %cst_9 {dimension_numbers = #tpu.dot_dimension_numbers<[1], [0], [0], [1], [0, 0, 1, 1], [], []>} : vector<32x32xf32>, vector<32x64xf32>, vector<32x64xf32> -> vector<32x64xf32>
    %c0_10 = arith.constant 0 : index
    %c0_11 = arith.constant 0 : index
    %c0_12 = arith.constant 0 : index
    %14 = vector.load %arg3[%c0_10, %c0_11, %c0_12] : memref<2x1x64xf32, #tpu.memory_space<vmem>>, vector<1x1x64xf32>
    %15 = vector.shape_cast %14 : vector<1x1x64xf32> to vector<1x64xf32>
    %16 = vector.broadcast %15 : vector<1x64xf32> to vector<32x64xf32>
    %17 = arith.addf %13, %16 : vector<32x64xf32>
    %18 = vector.extract_strided_slice %17 {offsets = [0, 0], sizes = [16, 32], strides = [1, 1]} : vector<32x64xf32> to vector<16x32xf32>
    %19 = vector.extract_strided_slice %17 {offsets = [16, 32], sizes = [16, 32], strides = [1, 1]} : vector<32x64xf32> to vector<16x32xf32>
    %cst_13 = arith.constant 0.699999988 : f32
    %20 = vector.broadcast %cst_13 : f32 to vector<16x32xf32>
    %21 = arith.mulf %20, %18 : vector<16x32xf32>
    %cst_14 = arith.constant 3.000000e-01 : f32
    %22 = vector.broadcast %cst_14 : f32 to vector<16x32xf32>
    %23 = arith.mulf %22, %19 : vector<16x32xf32>
    %24 = arith.negf %21 : vector<16x32xf32>
    %25 = math.exp %24 : vector<16x32xf32>
    %cst_15 = arith.constant 1.000000e+00 : f32
    %26 = vector.broadcast %cst_15 : f32 to vector<16x32xf32>
    %27 = arith.addf %26, %25 : vector<16x32xf32>
    %28 = arith.divf %26, %27 : vector<16x32xf32>
    %cst_16 = arith.constant 0.000000e+00 : f32
    %29 = vector.broadcast %cst_16 : f32 to vector<16x32xf32>
    %30 = arith.cmpf oge, %23, %29 : vector<16x32xf32>
    %cst_17 = arith.constant 0.00999999977 : f32
    %31 = vector.broadcast %cst_17 : f32 to vector<16x32xf32>
    %32 = arith.mulf %31, %23 : vector<16x32xf32>
    %33 = arith.select %30, %23, %32 : vector<16x32xi1>, vector<16x32xf32>
    %34 = arith.addf %28, %33 : vector<16x32xf32>
    %35 = arith.mulf %34, %34 : vector<16x32xf32>
    %cst_18 = arith.constant dense<0.000000e+00> : vector<16xf32>
    %36 = vector.multi_reduction <add>, %35, %cst_18 [1] : vector<16x32xf32> to vector<16xf32>
    %37 = vector.shape_cast %36 : vector<16xf32> to vector<16x1xf32>
    %cst_19 = arith.constant 1.000000e-24 : f32
    %38 = vector.broadcast %cst_19 : f32 to vector<16x1xf32>
    %39 = arith.maximumf %37, %38 : vector<16x1xf32>
    %40 = math.rsqrt %39 : vector<16x1xf32>
    %41 = vector.broadcast %40 : vector<16x1xf32> to vector<16x32xf32>
    %42 = arith.mulf %34, %41 : vector<16x32xf32>
    %c0_20 = arith.constant 0 : index
    %c32 = arith.constant 32 : index
    %43 = vector.load %arg4[%c0_20, %c32] : memref<16x96xf32, #tpu.memory_space<vmem>>, vector<16x32xf32>
    tpu.vector_store %arg4[%c0_20, %c32], %42 {strides = array<i32>} : memref<16x96xf32, #tpu.memory_space<vmem>>, vector<16x32xf32>,
    %cst_21 = arith.constant dense<0.000000e+00> : vector<32x32xf32>
    %44 = tpu.matmul %0, %34, %cst_21 {dimension_numbers = #tpu.dot_dimension_numbers<[1], [0], [0], [1], [0, 0, 1, 1], [], []>} : vector<32x16xf32>, vector<16x32xf32>, vector<32x32xf32> -> vector<32x32xf32>
    %45 = vector.extract_strided_slice %44 {offsets = [0, 0], sizes = [16, 32], strides = [1, 1]} : vector<32x32xf32> to vector<16x32xf32>
    %46 = arith.addf %34, %45 : vector<16x32xf32>
    %47 = vector.extract_strided_slice %44 {offsets = [16, 0], sizes = [16, 32], strides = [1, 1]} : vector<32x32xf32> to vector<16x32xf32>
    %48 = arith.mulf %34, %47 : vector<16x32xf32>
    %49 = tpu.concatenate %46, %48 in 0 : vector<16x32xf32>, vector<16x32xf32> -> vector<32x32xf32>
    %c1 = arith.constant 1 : index
    %c0_22 = arith.constant 0 : index
    %c0_23 = arith.constant 0 : index
    %50 = vector.load %arg2[%c1, %c0_22, %c0_23] : memref<2x32x64xf32, #tpu.memory_space<vmem>>, vector<1x32x64xf32>
    %51 = vector.shape_cast %50 : vector<1x32x64xf32> to vector<32x64xf32>
    %cst_24 = arith.constant dense<0.000000e+00> : vector<32x64xf32>
    %52 = tpu.matmul %49, %51, %cst_24 {dimension_numbers = #tpu.dot_dimension_numbers<[1], [0], [0], [1], [0, 0, 1, 1], [], []>} : vector<32x32xf32>, vector<32x64xf32>, vector<32x64xf32> -> vector<32x64xf32>
    %c1_25 = arith.constant 1 : index
    %c0_26 = arith.constant 0 : index
    %c0_27 = arith.constant 0 : index
    %53 = vector.load %arg3[%c1_25, %c0_26, %c0_27] : memref<2x1x64xf32, #tpu.memory_space<vmem>>, vector<1x1x64xf32>
    %54 = vector.shape_cast %53 : vector<1x1x64xf32> to vector<1x64xf32>
    %55 = vector.broadcast %54 : vector<1x64xf32> to vector<32x64xf32>
    %56 = arith.addf %52, %55 : vector<32x64xf32>
    %57 = vector.extract_strided_slice %56 {offsets = [0, 0], sizes = [16, 32], strides = [1, 1]} : vector<32x64xf32> to vector<16x32xf32>
    %58 = vector.extract_strided_slice %56 {offsets = [16, 32], sizes = [16, 32], strides = [1, 1]} : vector<32x64xf32> to vector<16x32xf32>
    %cst_28 = arith.constant 0.699999988 : f32
    %59 = vector.broadcast %cst_28 : f32 to vector<16x32xf32>
    %60 = arith.mulf %59, %57 : vector<16x32xf32>
    %cst_29 = arith.constant 3.000000e-01 : f32
    %61 = vector.broadcast %cst_29 : f32 to vector<16x32xf32>
    %62 = arith.mulf %61, %58 : vector<16x32xf32>
    %63 = arith.negf %60 : vector<16x32xf32>
    %64 = math.exp %63 : vector<16x32xf32>
    %cst_30 = arith.constant 1.000000e+00 : f32
    %65 = vector.broadcast %cst_30 : f32 to vector<16x32xf32>
    %66 = arith.addf %65, %64 : vector<16x32xf32>
    %67 = arith.divf %65, %66 : vector<16x32xf32>
    %cst_31 = arith.constant 0.000000e+00 : f32
    %68 = vector.broadcast %cst_31 : f32 to vector<16x32xf32>
    %69 = arith.cmpf oge, %62, %68 : vector<16x32xf32>
    %cst_32 = arith.constant 0.00999999977 : f32
    %70 = vector.broadcast %cst_32 : f32 to vector<16x32xf32>
    %71 = arith.mulf %70, %62 : vector<16x32xf32>
    %72 = arith.select %69, %62, %71 : vector<16x32xi1>, vector<16x32xf32>
    %73 = arith.addf %67, %72 : vector<16x32xf32>
    %74 = arith.mulf %73, %73 : vector<16x32xf32>
    %cst_33 = arith.constant dense<0.000000e+00> : vector<16xf32>
    %75 = vector.multi_reduction <add>, %74, %cst_33 [1] : vector<16x32xf32> to vector<16xf32>
    %76 = vector.shape_cast %75 : vector<16xf32> to vector<16x1xf32>
    %cst_34 = arith.constant 1.000000e-24 : f32
    %77 = vector.broadcast %cst_34 : f32 to vector<16x1xf32>
    %78 = arith.maximumf %76, %77 : vector<16x1xf32>
    %79 = math.rsqrt %78 : vector<16x1xf32>
    %80 = vector.broadcast %79 : vector<16x1xf32> to vector<16x32xf32>
    %81 = arith.mulf %73, %80 : vector<16x32xf32>
    %c0_35 = arith.constant 0 : index
    %c64 = arith.constant 64 : index
    %82 = vector.load %arg4[%c0_35, %c64] : memref<16x96xf32, #tpu.memory_space<vmem>>, vector<16x32xf32>
    tpu.vector_store %arg4[%c0_35, %c64], %81 {strides = array<i32>} : memref<16x96xf32, #tpu.memory_space<vmem>>, vector<16x32xf32>,
    return
  }
}

</mosaic_0001>

<llo_original>
// kernel: msmpn_forward.1
$region0: #{msmpn_forward.1}
  #allocation0 [shape = 'u32[]', space=smem, size = 0x4, offset = 0x4, fixed_abs, tag = 'smem constant byte address 0x4 - core index']
  #allocation1 [shape = 'u32[144,128]{1,0:T(1,128)}', space=vmem, size = 0x12000, scoped, tag = 'internal scratch']
  %s0 = inlined_call_operand.vmem [shape: f32[32,16], index: 0, kind: input, shape index: {}]
  %s1 = inlined_call_operand.vmem [shape: f32[16,32], index: 1, kind: input, shape index: {}]
  %s2 = inlined_call_operand.vmem [shape: f32[2,32,64], index: 2, kind: input, shape index: {}]
  %s3 = inlined_call_operand.vmem [shape: f32[2,1,64], index: 3, kind: input, shape index: {}]
  %s4 = inlined_call_operand.hbm [shape: f32[16,96], index: 4, kind: output, shape index: {}]
  %s5 = sld [smem:[#allocation0]]
  $region26: #{msmpn_forward.1} parent=0
    _
  %s7 = ssub.s32 1, %s5
  %s8 = scalar_select 0, %s7, %s5
  $region1: #{msmpn_forward.1} parent=0
    #allocation2 [shape = 'u8[8192]{0}', space=vmem, size = 0x2000, scoped, tag = 'output window, operand 0, single buffered']
    #allocation3 [shape = 's32[1]{0}', space=sflag, size = 0x4, scoped, tag = 'scoped memory for msmpn_forward.1']
    %9 = vsyncpa [#allocation3], 0
    // Predicated region
    $region2: #{msmpn_forward.1} parent=1 // pred_check
      _
    $region3: #{msmpn_forward.1} parent=1 // pred_check_branch
      %11 = sbr.rel (0) target = $region5
    $region4: #{msmpn_forward.1} parent=1 // pred_region
      _
    $region5: #{msmpn_forward.1} parent=1 // pred_fallthru
      _
    // Predicated region
    $region6: #{msmpn_forward.1} parent=1 // pred_check
      _
    $region7: #{msmpn_forward.1} parent=1 // pred_check_branch
      %13 = sbr.rel (0) target = $region9
    $region8: #{msmpn_forward.1} parent=1 // pred_region
      _
    $region9: #{msmpn_forward.1} parent=1 // pred_fallthru
      _
    // Predicated region
    $region10: #{msmpn_forward.1} parent=1 // pred_check
      _
    $region11: #{msmpn_forward.1} parent=1 // pred_check_branch
      %15 = sbr.rel (0) target = $region13
    $region12: #{msmpn_forward.1} parent=1 // pred_region
      _
    $region13: #{msmpn_forward.1} parent=1 // pred_fallthru
      _
    // Predicated region
    $region14: #{msmpn_forward.1} parent=1 // pred_check
      _
    $region15: #{msmpn_forward.1} parent=1 // pred_check_branch
      %17 = sbr.rel (0) target = $region17
    $region16: #{msmpn_forward.1} parent=1 // pred_region
      _
    $region17: #{msmpn_forward.1} parent=1 // pred_fallthru
      _
    %v18 = vld [vmem:[%s0] sm:$0xff]
    %v19 = vld [vmem:[%s0 + $0x8] sm:$0xff]
    %v20 = vld [vmem:[%s0 + $0x10] sm:$0xff]
    %v21 = vld [vmem:[%s0 + $0x18] sm:$0xff]
    %v22 = vld [vmem:[%s1] sm:$0xff]
    %v23 = vld [vmem:[%s1 + $0x8] sm:$0xff]
    %v24 = vmul.f32 %v22, 2.0
    %v25 = vmul.f32 %v23, 2.0
    %vm26 = vcmask 261120
    %27 = vst.msk [vmem:[#allocation2] sm:$0xff] %vm26, %v24
    %28 = vst.msk [vmem:[#allocation2 + $0x8] sm:$0xff] %vm26, %v25
    %vm29 = vcmask 130048
    %v31 = vsel %vm29, %v18, 0
    %v34 = vsel %vm29, %v19, 0
    %v37 = vsel %vm29, %v20, 0
    %v40 = vsel %vm29, %v21, 0
    %42 = vmatprep.subr.mxu0 0.0
    %43 = vmatpush1.msra.mxu0 %v22
    %44 = vmatprep.subr.mxu0 0.0
    %45 = vmatpush1.msra.mxu0 %v23
    %46 = vmatprep.subr.mxu0 0.0
    %47 = vmatpush1.msra.mxu0 0.0
    %48 = vmatprep.subr.mxu0 0.0
    %49 = vmatpush1.msra.mxu0 0.0
    %50 = vmatprep.subr.mxu0 0.0
    %51 = vmatpush1.msra.mxu0 0.0
    %52 = vmatprep.subr.mxu0 0.0
    %53 = vmatpush1.msra.mxu0 0.0
    %54 = vmatprep.subr.mxu0 0.0
    %55 = vmatpush1.msra.mxu0 0.0
    %56 = vmatprep.subr.mxu0 0.0
    %57 = vmatpush1.msra.mxu0 0.0
    %58 = vmatprep.subr.mxu0 0.0
    %59 = vmatpush1.msra.mxu0 0.0
    %60 = vmatprep.subr.mxu0 0.0
    %61 = vmatpush1.msra.mxu0 0.0
    %62 = vmatprep.subr.mxu0 0.0
    %63 = vmatpush1.msra.mxu0 0.0
    %64 = vmatprep.subr.mxu0 0.0
    %65 = vmatpush1.msra.mxu0 0.0
    %66 = vmatprep.subr.mxu0 0.0
    %67 = vmatpush1.msra.mxu0 0.0
    %68 = vmatprep.subr.mxu0 0.0
    %69 = vmatpush1.msra.mxu0 0.0
    %70 = vmatprep.subr.mxu0 0.0
    %71 = vmatpush1.msra.mxu0 0.0
    %72 = vmatprep.subr.mxu0 0.0
    %73 = vmatpush1.msra.mxu0 0.0
    %74 = vmatprep.subr.mxu0 0.0
    %75 = vmatpush1.msra.mxu0 0.0
    %76 = vmatprep.subr.mxu0 0.0
    %77 = vmatpush1.msra.mxu0 0.0
    %78 = vmatprep.subr.mxu0 0.0
    %79 = vmatpush1.msra.mxu0 0.0
    %80 = vmatprep.subr.mxu0 0.0
    %81 = vmatpush1.msra.mxu0 0.0
    %82 = vmatprep.subr.mxu0 0.0
    %83 = vmatpush1.msra.mxu0 0.0
    %84 = vmatprep.subr.mxu0 0.0
    %85 = vmatpush1.msra.mxu0 0.0
    %86 = vmatprep.subr.mxu0 0.0
    %87 = vmatpush1.msra.mxu0 0.0
    %88 = vmatprep.subr.mxu0 0.0
    %89 = vmatpush1.msra.mxu0 0.0
    %90 = vmatprep.subr.mxu0 0.0
    %91 = vmatpush1.msra.mxu0 0.0
    %92 = vmatprep.subr.mxu0 0.0
    %93 = vmatpush1.msra.mxu0 0.0
    %94 = vmatprep.subr.mxu0 0.0
    %95 = vmatpush1.msra.mxu0 0.0
    %96 = vmatprep.subr.mxu0 0.0
    %97 = vmatpush1.msra.mxu0 0.0
    %98 = vmatprep.subr.mxu0 0.0
    %99 = vmatpush1.msra.mxu0 0.0
    %100 = vmatprep.subr.mxu0 0.0
    %101 = vmatpush1.msra.mxu0 0.0
    %102 = vmatprep.subr.mxu0 0.0
    %103 = vmatpush1.msra.mxu0 0.0
    %104 = vmatprep.subr.mxu0 0.0
    %105 = vmatpush1.msra.mxu0 0.0
    %106 = vmatprep.mubr.f32.mxu0 0.0
    %107 = vmatmul.mubr.f32.gmra.mrb[0].mxu0 %v31
    %v108 = vpop.f32.mrb[0].mxu0
    %v109 = vadd.f32 0.0, %v108
    %v110 = vpop.f32.mrb[0].mxu0
    %111 = vmatprep.mubr.f32.mxu0 0.0
    %112 = vmatmul.mubr.f32.gmra.mrb[0].mxu0 %v34
    %v113 = vpop.f32.mrb[0].mxu0
    %v114 = vadd.f32 0.0, %v113
    %v115 = vpop.f32.mrb[0].mxu0
    %116 = vmatprep.mubr.f32.mxu0 0.0
    %117 = vmatmul.mubr.f32.gmra.mrb[0].mxu0 %v37
    %v118 = vpop.f32.mrb[0].mxu0
    %v119 = vadd.f32 0.0, %v118
    %v120 = vpop.f32.mrb[0].mxu0
    %121 = vmatprep.mubr.f32.mxu0 0.0
    %122 = vmatmul.mubr.f32.gmra.mrb[0].mxu0 %v40
    %v123 = vpop.f32.mrb[0].mxu0
    %v124 = vadd.f32 0.0, %v123
    %v125 = vpop.f32.mrb[0].mxu0
    %126 = vdwg.mxu0
    %v127 = vadd.f32 %v22, %v109
    %v128 = vadd.f32 %v23, %v114
    %v129 = vmul.f32 %v22, %v119
    %v130 = vmul.f32 %v23, %v124
    %v131 = vld [vmem:[%s2] sm:$0xff]
    %v132 = vld [vmem:[%s2 + $0x8] sm:$0xff]
    %v133 = vld [vmem:[%s2 + $0x10] sm:$0xff]
    %v134 = vld [vmem:[%s2 + $0x18] sm:$0xff]
    %v135 = vld [vmem:[%s3] sm:$0x1]
    %v137 = vlaneseq
    %v138 = vshrl.u32 %v137, 7
    %v139 = vsub.s32 0, %v138
    %v140 = vrot.slane %v135, %v139
    %v143 = vsel %vm26, %v127, 0
    %v146 = vsel %vm26, %v128, 0
    %v149 = vsel %vm26, %v129, 0
    %v152 = vsel %vm26, %v130, 0
    %154 = vmatprep.subr.mxu0 0.0
    %155 = vmatpush1.msra.mxu0 %v131
    %156 = vmatprep.subr.mxu0 0.0
    %157 = vmatpush1.msra.mxu0 %v132
    %158 = vmatprep.subr.mxu0 0.0
    %159 = vmatpush1.msra.mxu0 %v133
    %160 = vmatprep.subr.mxu0 0.0
    %161 = vmatpush1.msra.mxu0 %v134
    %162 = vmatprep.subr.mxu0 0.0
    %163 = vmatpush1.msra.mxu0 0.0
    %164 = vmatprep.subr.mxu0 0.0
    %165 = vmatpush1.msra.mxu0 0.0
    %166 = vmatprep.subr.mxu0 0.0
    %167 = vmatpush1.msra.mxu0 0.0
    %168 = vmatprep.subr.mxu0 0.0
    %169 = vmatpush1.msra.mxu0 0.0
    %170 = vmatprep.subr.mxu0 0.0
    %171 = vmatpush1.msra.mxu0 0.0
    %172 = vmatprep.subr.mxu0 0.0
    %173 = vmatpush1.msra.mxu0 0.0
    %174 = vmatprep.subr.mxu0 0.0
    %175 = vmatpush1.msra.mxu0 0.0
    %176 = vmatprep.subr.mxu0 0.0
    %177 = vmatpush1.msra.mxu0 0.0
    %178 = vmatprep.subr.mxu0 0.0
    %179 = vmatpush1.msra.mxu0 0.0
    %180 = vmatprep.subr.mxu0 0.0
    %181 = vmatpush1.msra.mxu0 0.0
    %182 = vmatprep.subr.mxu0 0.0
    %183 = vmatpush1.msra.mxu0 0.0
    %184 = vmatprep.subr.mxu0 0.0
    %185 = vmatpush1.msra.mxu0 0.0
    %186 = vmatprep.subr.mxu0 0.0
    %187 = vmatpush1.msra.mxu0 0.0
    %188 = vmatprep.subr.mxu0 0.0
    %189 = vmatpush1.msra.mxu0 0.0
    %190 = vmatprep.subr.mxu0 0.0
    %191 = vmatpush1.msra.mxu0 0.0
    %192 = vmatprep.subr.mxu0 0.0
    %193 = vmatpush1.msra.mxu0 0.0
    %194 = vmatprep.subr.mxu0 0.0
    %195 = vmatpush1.msra.mxu0 0.0
    %196 = vmatprep.subr.mxu0 0.0
    %197 = vmatpush1.msra.mxu0 0.0
    %198 = vmatprep.subr.mxu0 0.0
    %199 = vmatpush1.msra.mxu0 0.0
    %200 = vmatprep.subr.mxu0 0.0
    %201 = vmatpush1.msra.mxu0 0.0
    %202 = vmatprep.subr.mxu0 0.0
    %203 = vmatpush1.msra.mxu0 0.0
    %204 = vmatprep.subr.mxu0 0.0
    %205 = vmatpush1.msra.mxu0 0.0
    %206 = vmatprep.subr.mxu0 0.0
    %207 = vmatpush1.msra.mxu0 0.0
    %208 = vmatprep.subr.mxu0 0.0
    %209 = vmatpush1.msra.mxu0 0.0
    %210 = vmatprep.subr.mxu0 0.0
    %211 = vmatpush1.msra.mxu0 0.0
    %212 = vmatprep.subr.mxu0 0.0
    %213 = vmatpush1.msra.mxu0 0.0
    %214 = vmatprep.subr.mxu0 0.0
    %215 = vmatpush1.msra.mxu0 0.0
    %216 = vmatprep.subr.mxu0 0.0
    %217 = vmatpush1.msra.mxu0 0.0
    %218 = vmatprep.mubr.f32.mxu0 0.0
    %219 = vmatmul.mubr.f32.gmra.mrb[0].mxu0 %v143
    %v220 = vpop.f32.mrb[0].mxu0
    %v221 = vadd.f32 %v140, %v220
    %v222 = vpop.f32.mrb[0].mxu0
    %223 = vmatprep.mubr.f32.mxu0 0.0
    %224 = vmatmul.mubr.f32.gmra.mrb[0].mxu0 %v146
    %v225 = vpop.f32.mrb[0].mxu0
    %v226 = vadd.f32 %v140, %v225
    %v227 = vpop.f32.mrb[0].mxu0
    %228 = vmatprep.mubr.f32.mxu0 0.0
    %229 = vmatmul.mubr.f32.gmra.mrb[0].mxu0 %v149
    %v230 = vpop.f32.mrb[0].mxu0
    %v231 = vadd.f32 %v140, %v230
    %v232 = vpop.f32.mrb[0].mxu0
    %233 = vmatprep.mubr.f32.mxu0 0.0
    %234 = vmatmul.mubr.f32.gmra.mrb[0].mxu0 %v152
    %v235 = vpop.f32.mrb[0].mxu0
    %v236 = vadd.f32 %v140, %v235
    %v237 = vpop.f32.mrb[0].mxu0
    %238 = vdwg.mxu0
    %v239 = vmul.f32 %v221, 0.7
    %v240 = vmul.f32 %v226, 0.7
    %v241 = vmul.f32 %v231, 0.3
    %v242 = vmul.f32 %v236, 0.3
    %v243 = vxor.u32 %v239, 2147483648
    %v244 = vxor.u32 %v240, 2147483648
    %v245 = vmul.f32 %v243, 1.442695
    %v246 = vpow.pop %v245
    %v247 = vmul.f32 %v244, 1.442695
    %v248 = vpow.pop %v247
    %v249 = vadd.f32 %v246, 1.0
    %v250 = vadd.f32 %v248, 1.0
    %v251 = vrcp.pop %v249
    %v252 = vmul.f32 1.0, %v251
    %v253 = vrcp.pop %v250
    %v254 = vmul.f32 1.0, %v253
    %vm255 = vcmp.ge.f32.partialorder %v241, 0.0
    %vm256 = vcmp.ge.f32.partialorder %v242, 0.0
    %v257 = vmul.f32 %v241, 0.01
    %v258 = vmul.f32 %v242, 0.01
    %v259 = vsel %vm255, %v241, %v257
    %v260 = vsel %vm256, %v242, %v258
    %263 = vrot.lane.b32.xlu0 %v259, 96
    %v264 = vpop.permute.xlu0 %263
    %265 = vrot.lane.b32.xlu0 %v260, 96
    %v266 = vpop.permute.xlu0 %265
    %v269 = vadd.f32 %v252, %v264
    %v270 = vadd.f32 %v254, %v266
    %v271 = vmul.f32 %v269, %v269
    %v272 = vmul.f32 %v270, %v270
    %v273 = vsel %vm26, %v271, 0.0
    %274 = vadd.xlane.f32.xlu0 %v273
    %v275 = vpop.xlane.xlu0 %274
    %v276 = vsel %vm26, %v272, 0.0
    %277 = vadd.xlane.f32.xlu0 %v276
    %v278 = vpop.xlane.xlu0 %277
    %v279 = vmax.f32 %v275, 1e-24
    %v280 = vmax.f32 %v278, 1e-24
    %v281 = vrsqrt.pop %v279
    %v282 = vrsqrt.pop %v280
    %v283 = vmul.f32 %v269, %v281
    %v284 = vmul.f32 %v270, %v282
    %287 = vrot.lane.b32.xlu0 %v283, 32
    %v288 = vpop.permute.xlu0 %287
    %289 = vrot.lane.b32.xlu0 %v284, 32
    %v290 = vpop.permute.xlu0 %289
    %vm293 = vcmask 523520
    %294 = vst.msk [vmem:[#allocation2] sm:$0xff] %vm293, %v288
    %295 = vst.msk [vmem:[#allocation2 + $0x8] sm:$0xff] %vm293, %v290
    %296 = vmatprep.subr.mxu0 0.0
    %297 = vmatpush1.msra.mxu0 %v269
    %298 = vmatprep.subr.mxu0 0.0
    %299 = vmatpush1.msra.mxu0 %v270
    %300 = vmatprep.subr.mxu0 0.0
    %301 = vmatpush1.msra.mxu0 0.0
    %302 = vmatprep.subr.mxu0 0.0
    %303 = vmatpush1.msra.mxu0 0.0
    %304 = vmatprep.subr.mxu0 0.0
    %305 = vmatpush1.msra.mxu0 0.0
    %306 = vmatprep.subr.mxu0 0.0
    %307 = vmatpush1.msra.mxu0 0.0
    %308 = vmatprep.subr.mxu0 0.0
    %309 = vmatpush1.msra.mxu0 0.0
    %310 = vmatprep.subr.mxu0 0.0
    %311 = vmatpush1.msra.mxu0 0.0
    %312 = vmatprep.subr.mxu0 0.0
    %313 = vmatpush1.msra.mxu0 0.0
    %314 = vmatprep.subr.mxu0 0.0
    %315 = vmatpush1.msra.mxu0 0.0
    %316 = vmatprep.subr.mxu0 0.0
    %317 = vmatpush1.msra.mxu0 0.0
    %318 = vmatprep.subr.mxu0 0.0
    %319 = vmatpush1.msra.mxu0 0.0
    %320 = vmatprep.subr.mxu0 0.0
    %321 = vmatpush1.msra.mxu0 0.0
    %322 = vmatprep.subr.mxu0 0.0
    %323 = vmatpush1.msra.mxu0 0.0
    %324 = vmatprep.subr.mxu0 0.0
    %325 = vmatpush1.msra.mxu0 0.0
    %326 = vmatprep.subr.mxu0 0.0
    %327 = vmatpush1.msra.mxu0 0.0
    %328 = vmatprep.subr.mxu0 0.0
    %329 = vmatpush1.msra.mxu0 0.0
    %330 = vmatprep.subr.mxu0 0.0
    %331 = vmatpush1.msra.mxu0 0.0
    %332 = vmatprep.subr.mxu0 0.0
    %333 = vmatpush1.msra.mxu0 0.0
    %334 = vmatprep.subr.mxu0 0.0
    %335 = vmatpush1.msra.mxu0 0.0
    %336 = vmatprep.subr.mxu0 0.0
    %337 = vmatpush1.msra.mxu0 0.0
    %338 = vmatprep.subr.mxu0 0.0
    %339 = vmatpush1.msra.mxu0 0.0
    %340 = vmatprep.subr.mxu0 0.0
    %341 = vmatpush1.msra.mxu0 0.0
    %342 = vmatprep.subr.mxu0 0.0
    %343 = vmatpush1.msra.mxu0 0.0
    %344 = vmatprep.subr.mxu0 0.0
    %345 = vmatpush1.msra.mxu0 0.0
    %346 = vmatprep.subr.mxu0 0.0
    %347 = vmatpush1.msra.mxu0 0.0
    %348 = vmatprep.subr.mxu0 0.0
    %349 = vmatpush1.msra.mxu0 0.0
    %350 = vmatprep.subr.mxu0 0.0
    %351 = vmatpush1.msra.mxu0 0.0
    %352 = vmatprep.subr.mxu0 0.0
    %353 = vmatpush1.msra.mxu0 0.0
    %354 = vmatprep.subr.mxu0 0.0
    %355 = vmatpush1.msra.mxu0 0.0
    %356 = vmatprep.subr.mxu0 0.0
    %357 = vmatpush1.msra.mxu0 0.0
    %358 = vmatprep.subr.mxu0 0.0
    %359 = vmatpush1.msra.mxu0 0.0
    %360 = vmatprep.mubr.f32.mxu0 0.0
    %361 = vmatmul.mubr.f32.gmra.mrb[0].mxu0 %v31
    %v362 = vpop.f32.mrb[0].mxu0
    %v363 = vadd.f32 0.0, %v362
    %v364 = vpop.f32.mrb[0].mxu0
    %365 = vmatprep.mubr.f32.mxu0 0.0
    %366 = vmatmul.mubr.f32.gmra.mrb[0].mxu0 %v34
    %v367 = vpop.f32.mrb[0].mxu0
    %v368 = vadd.f32 0.0, %v367
    %v369 = vpop.f32.mrb[0].mxu0
    %370 = vmatprep.mubr.f32.mxu0 0.0
    %371 = vmatmul.mubr.f32.gmra.mrb[0].mxu0 %v37
    %v372 = vpop.f32.mrb[0].mxu0
    %v373 = vadd.f32 0.0, %v372
    %v374 = vpop.f32.mrb[0].mxu0
    %375 = vmatprep.mubr.f32.mxu0 0.0
    %376 = vmatmul.mubr.f32.gmra.mrb[0].mxu0 %v40
    %v377 = vpop.f32.mrb[0].mxu0
    %v378 = vadd.f32 0.0, %v377
    %v379 = vpop.f32.mrb[0].mxu0
    %380 = vdwg.mxu0
    %v381 = vadd.f32 %v269, %v363
    %v382 = vadd.f32 %v270, %v368
    %v383 = vmul.f32 %v269, %v373
    %v384 = vmul.f32 %v270, %v378
    %s385 = scalar_lea.vmem %s2, 32
    %v386 = vld [vmem:[%s385] sm:$0xff]
    %v387 = vld [vmem:[%s385 + $0x8] sm:$0xff]
    %v388 = vld [vmem:[%s385 + $0x10] sm:$0xff]
    %v389 = vld [vmem:[%s385 + $0x18] sm:$0xff]
    %s390 = scalar_lea.vmem %s3, 1
    %v391 = vld [vmem:[%s390] sm:$0x1]
    %v393 = vlaneseq
    %v394 = vshrl.u32 %v393, 7
    %v395 = vsub.s32 0, %v394
    %v396 = vrot.slane %v391, %v395
    %v399 = vsel %vm26, %v381, 0
    %v402 = vsel %vm26, %v382, 0
    %v405 = vsel %vm26, %v383, 0
    %v408 = vsel %vm26, %v384, 0
    %410 = vmatprep.subr.mxu0 0.0
    %411 = vmatpush1.msra.mxu0 %v386
    %412 = vmatprep.subr.mxu0 0.0
    %413 = vmatpush1.msra.mxu0 %v387
    %414 = vmatprep.subr.mxu0 0.0
    %415 = vmatpush1.msra.mxu0 %v388
    %416 = vmatprep.subr.mxu0 0.0
    %417 = vmatpush1.msra.mxu0 %v389
    %418 = vmatprep.subr.mxu0 0.0
    %419 = vmatpush1.msra.mxu0 0.0
    %420 = vmatprep.subr.mxu0 0.0
    %421 = vmatpush1.msra.mxu0 0.0
    %422 = vmatprep.subr.mxu0 0.0
    %423 = vmatpush1.msra.mxu0 0.0
    %424 = vmatprep.subr.mxu0 0.0
    %425 = vmatpush1.msra.mxu0 0.0
    %426 = vmatprep.subr.mxu0 0.0
    %427 = vmatpush1.msra.mxu0 0.0
    %428 = vmatprep.subr.mxu0 0.0
    %429 = vmatpush1.msra.mxu0 0.0
    %430 = vmatprep.subr.mxu0 0.0
    %431 = vmatpush1.msra.mxu0 0.0
    %432 = vmatprep.subr.mxu0 0.0
    %433 = vmatpush1.msra.mxu0 0.0
    %434 = vmatprep.subr.mxu0 0.0
    %435 = vmatpush1.msra.mxu0 0.0
    %436 = vmatprep.subr.mxu0 0.0
    %437 = vmatpush1.msra.mxu0 0.0
    %438 = vmatprep.subr.mxu0 0.0
    %439 = vmatpush1.msra.mxu0 0.0
    %440 = vmatprep.subr.mxu0 0.0
    %441 = vmatpush1.msra.mxu0 0.0
    %442 = vmatprep.subr.mxu0 0.0
    %443 = vmatpush1.msra.mxu0 0.0
    %444 = vmatprep.subr.mxu0 0.0
    %445 = vmatpush1.msra.mxu0 0.0
    %446 = vmatprep.subr.mxu0 0.0
    %447 = vmatpush1.msra.mxu0 0.0
    %448 = vmatprep.subr.mxu0 0.0
    %449 = vmatpush1.msra.mxu0 0.0
    %450 = vmatprep.subr.mxu0 0.0
    %451 = vmatpush1.msra.mxu0 0.0
    %452 = vmatprep.subr.mxu0 0.0
    %453 = vmatpush1.msra.mxu0 0.0
    %454 = vmatprep.subr.mxu0 0.0
    %455 = vmatpush1.msra.mxu0 0.0
    %456 = vmatprep.subr.mxu0 0.0
    %457 = vmatpush1.msra.mxu0 0.0
    %458 = vmatprep.subr.mxu0 0.0
    %459 = vmatpush1.msra.mxu0 0.0
    %460 = vmatprep.subr.mxu0 0.0
    %461 = vmatpush1.msra.mxu0 0.0
    %462 = vmatprep.subr.mxu0 0.0
    %463 = vmatpush1.msra.mxu0 0.0
    %464 = vmatprep.subr.mxu0 0.0
    %465 = vmatpush1.msra.mxu0 0.0
    %466 = vmatprep.subr.mxu0 0.0
    %467 = vmatpush1.msra.mxu0 0.0
    %468 = vmatprep.subr.mxu0 0.0
    %469 = vmatpush1.msra.mxu0 0.0
    %470 = vmatprep.subr.mxu0 0.0
    %471 = vmatpush1.msra.mxu0 0.0
    %472 = vmatprep.subr.mxu0 0.0
    %473 = vmatpush1.msra.mxu0 0.0
    %474 = vmatprep.mubr.f32.mxu0 0.0
    %475 = vmatmul.mubr.f32.gmra.mrb[0].mxu0 %v399
    %v476 = vpop.f32.mrb[0].mxu0
    %v477 = vadd.f32 %v396, %v476
    %v478 = vpop.f32.mrb[0].mxu0
    %479 = vmatprep.mubr.f32.mxu0 0.0
    %480 = vmatmul.mubr.f32.gmra.mrb[0].mxu0 %v402
    %v481 = vpop.f32.mrb[0].mxu0
    %v482 = vadd.f32 %v396, %v481
    %v483 = vpop.f32.mrb[0].mxu0
    %484 = vmatprep.mubr.f32.mxu0 0.0
    %485 = vmatmul.mubr.f32.gmra.mrb[0].mxu0 %v405
    %v486 = vpop.f32.mrb[0].mxu0
    %v487 = vadd.f32 %v396, %v486
    %v488 = vpop.f32.mrb[0].mxu0
    %489 = vmatprep.mubr.f32.mxu0 0.0
    %490 = vmatmul.mubr.f32.gmra.mrb[0].mxu0 %v408
    %v491 = vpop.f32.mrb[0].mxu0
    %v492 = vadd.f32 %v396, %v491
    %v493 = vpop.f32.mrb[0].mxu0
    %494 = vdwg.mxu0
    %v495 = vmul.f32 %v477, 0.7
    %v496 = vmul.f32 %v482, 0.7
    %v497 = vmul.f32 %v487, 0.3
    %v498 = vmul.f32 %v492, 0.3
    %v499 = vxor.u32 %v495, 2147483648
    %v500 = vxor.u32 %v496, 2147483648
    %v501 = vmul.f32 %v499, 1.442695
    %v502 = vpow.pop %v501
    %v503 = vmul.f32 %v500, 1.442695
    %v504 = vpow.pop %v503
    %v505 = vadd.f32 %v502, 1.0
    %v506 = vadd.f32 %v504, 1.0
    %v507 = vrcp.pop %v505
    %v508 = vmul.f32 1.0, %v507
    %v509 = vrcp.pop %v506
    %v510 = vmul.f32 1.0, %v509
    %vm511 = vcmp.ge.f32.partialorder %v497, 0.0
    %vm512 = vcmp.ge.f32.partialorder %v498, 0.0
    %v513 = vmul.f32 %v497, 0.01
    %v514 = vmul.f32 %v498, 0.01
    %v515 = vsel %vm511, %v497, %v513
    %v516 = vsel %vm512, %v498, %v514
    %519 = vrot.lane.b32.xlu0 %v515, 96
    %v520 = vpop.permute.xlu0 %519
    %521 = vrot.lane.b32.xlu0 %v516, 96
    %v522 = vpop.permute.xlu0 %521
    %v525 = vadd.f32 %v508, %v520
    %v526 = vadd.f32 %v510, %v522
    %v527 = vmul.f32 %v525, %v525
    %v528 = vmul.f32 %v526, %v526
    %v529 = vsel %vm26, %v527, 0.0
    %530 = vadd.xlane.f32.xlu0 %v529
    %v531 = vpop.xlane.xlu0 %530
    %v532 = vsel %vm26, %v528, 0.0
    %533 = vadd.xlane.f32.xlu0 %v532
    %v534 = vpop.xlane.xlu0 %533
    %v535 = vmax.f32 %v531, 1e-24
    %v536 = vmax.f32 %v534, 1e-24
    %v537 = vrsqrt.pop %v535
    %v538 = vrsqrt.pop %v536
    %v539 = vmul.f32 %v525, %v537
    %v540 = vmul.f32 %v526, %v538
    %543 = vrot.lane.b32.xlu0 %v539, 64
    %v544 = vpop.permute.xlu0 %543
    %545 = vrot.lane.b32.xlu0 %v540, 64
    %v546 = vpop.permute.xlu0 %545
    %vm549 = vcmask 785920
    %550 = vst.msk [vmem:[#allocation2] sm:$0xff] %vm549, %v544
    %551 = vst.msk [vmem:[#allocation2 + $0x8] sm:$0xff] %vm549, %v546
    // Predicated region
    $region18: #{msmpn_forward.1} parent=1 // pred_check
      _
    $region19: #{msmpn_forward.1} parent=1 // pred_check_branch
      %553 = sbr.rel (0) target = $region21
    $region20: #{msmpn_forward.1} parent=1 // pred_region
      %s555 = ssub.s32 256, 256
      %556 = vsyncadd [#allocation3], %s555
      %s557 = sshll.u32 [#allocation2], 4
      %s558 = int_to_ptr.vmem [resolvable:$true] %s557
      %563 = dma.vmem_to_hbm [thread:$0]  %s558, 256, %s4, [#allocation3], 128, 128, 8
    $region21: #{msmpn_forward.1} parent=1 // pred_fallthru
      _
    // Predicated region
    $region22: #{msmpn_forward.1} parent=1 // pred_check
      _
    $region23: #{msmpn_forward.1} parent=1 // pred_check_branch
      %565 = sbr.rel (0) target = $region25
    $region24: #{msmpn_forward.1} parent=1 // pred_region
      %566 = dma.done [#allocation3], 256
    $region25: #{msmpn_forward.1} parent=1 // pred_fallthru
      _
    %567 = vsyncpa [#allocation3], 1

</llo_original>
